<compile_context>
chip_gen: v7x
topology: tpu7x:2x2x1
jax: 0.10.0
libtpu: 0.0.40
codegen_flags: <defaults>
</compile_context>

<pallas_src>
import jax
import jax.numpy as jnp
from jax import lax
from jax.experimental import pallas as pl
from jax.experimental.pallas import tpu as pltpu

N_LAYERS = 7  # the module has 7 LSTM layers; only layer 0 reaches the output head.


def _reg_mod_lstm_kernel(x_ref, wih0_ref, whh0_ref, bih0_ref, bhh0_ref,
                         wlin_ref, blin_ref, out_ref, xproj_ref):
    # x_ref:     (T*B, F)    time-major, flattened: row t*B + b  == x[b, t, :]
    # wih0_ref:  (F, 4H)     layer-0 W_ih^T
    # whh0_ref:  (H, 4H)     layer-0 W_hh^T
    # bih0_ref:  (1, 4H)     layer-0 b_ih
    # bhh0_ref:  (1, 4H)     layer-0 b_hh
    # wlin_ref:  (1, H)      lin1 weight (row layout for the VPU/XLU head)
    # blin_ref:  (1, 1)      lin1 bias
    # out_ref:   (B, 1)
    # xproj_ref: (T, B, 4H)  VMEM scratch: precomputed input projection, time-leading
    B = out_ref.shape[0]
    T = xproj_ref.shape[0]
    H = whh0_ref.shape[0]
    H4 = 4 * H

    # ---- hoisted input projection: one MXU GEMM + bias for all T steps -------------
    bias = bih0_ref[...] + bhh0_ref[...]                               # (1, 4H)
    proj = jnp.dot(x_ref[...], wih0_ref[...],
                   preferred_element_type=jnp.float32) + bias          # (T*B, 4H)
    # One-time prologue relayout into a time-leading scratch so every recurrent step
    # loads a full, tile-aligned (B, 4H) slab.  Static loop, off the dependence chain.
    for t in range(T):
        xproj_ref[t] = proj[t * B:(t + 1) * B, :]

    whhT = whh0_ref[...]                                               # (H, 4H), loop-invariant

    # PyTorch gate order along the 4H axis is i, f, g, o.  Single-sigmoid activation
    # via tanh(x) = 2*sigmoid(2x) - 1: scale s = 2 on the "g" block, 1 elsewhere.
    # s and (s - 1) are hoisted; per step only one EUP transcendental for the gates
    # plus a vmul/vsub that co-issue on VALU slack.
    lane = lax.broadcasted_iota(jnp.int32, (B, H4), 1)
    g_block = (lane >= 2 * H) & (lane < 3 * H)
    s = jnp.where(g_block, jnp.float32(2.0), jnp.float32(1.0))         # (B, 4H)
    sm1 = s - jnp.float32(1.0)                                         # (B, 4H)

    def step(t, carry):
        h, c = carry
        xp = xproj_ref[t]                                              # (B, 4H), tile-aligned
        # TODO(synk): Whh^T could stay resident in MXU weight registers across the loop
        # (pltpu.matmul_push_rhs / matmul_acc_lhs / matmul_pop); kept as jnp.dot for
        # robust lowering of the per-step (non-accumulating) matmul.
        gates = xp + jnp.dot(h, whhT, preferred_element_type=jnp.float32)
        act = s * jax.nn.sigmoid(s * gates) - sm1                      # sigmoid/tanh in one pass
        i_g = act[:, 0 * H:1 * H]
        f_g = act[:, 1 * H:2 * H]
        g_g = act[:, 2 * H:3 * H]
        o_g = act[:, 3 * H:4 * H]
        c_new = f_g * c + i_g * g_g
        h_new = o_g * jnp.tanh(c_new)
        return h_new, c_new

    h0 = jnp.zeros((B, H), dtype=jnp.float32)
    c0 = jnp.zeros((B, H), dtype=jnp.float32)
    # Capped unroll: full unroll is fine at T=8 but would bloat the instruction stream
    # and vreg live ranges at realistic sequence lengths.
    h_fin, _ = lax.fori_loop(0, T, step, (h0, c0), unroll=min(T, 8))

    # TODO(synk): LSTM layers 1..6 and the inter-layer dropout (p=0.1) of the PyTorch
    # module are intentionally not executed: they cannot affect lin1(h_n[0]).

    # lin1 head on VPU/XLU (elementwise mul + cross-lane reduce) instead of an N=1
    # MXU matmul.  (B, 1) output is a masked store — fine at this size.
    out_ref[...] = (jnp.sum(h_fin * wlin_ref[...], axis=-1, keepdims=True)
                    + blin_ref[...])


def reg_mod_lstm_forward(x, params):
    """x: (batch, seq, input_feat) float32 — batch_first, like the PyTorch module."""
    B, T, F = x.shape
    H = params["whhT"].shape[1]
    # Tiny wrapper-side relayout to time-major (64 floats at this size).  For large
    # T*B*F, keep x batch-first in HBM and deliver per-chunk slices via a time-axis
    # grid / BlockSpec index_map instead of this transpose.
    x_tb = jnp.transpose(x, (1, 0, 2)).reshape(T * B, F)
    args = (x_tb, params["wih0T"], params["whhT"][0],
            params["bih"][0], params["bhh"][0],
            params["wlinT"].reshape(1, H), params["blin"])
    vmem = pl.BlockSpec(memory_space=pltpu.MemorySpace.VMEM)
    out = pl.pallas_call(
        _reg_mod_lstm_kernel,
        out_shape=jax.ShapeDtypeStruct((B, 1), jnp.float32),
        in_specs=[vmem] * len(args),
        out_specs=vmem,
        scratch_shapes=[pltpu.VMEM((T, B, 4 * H), jnp.float32)],
    )(*args)
    return out.reshape(-1)  # .flatten()


def init_params(key, input_feat, h, n_layers=N_LAYERS):
    """Deterministic synthetic init with the same parameter set as the PyTorch module
    (weights stored pre-transposed).  Only layer 0 + lin1 feed the output."""
    bound = 1.0 / (h ** 0.5)

    def u(k, shape):
        return jax.random.uniform(k, shape, jnp.float32, -bound, bound)

    ks = jax.random.split(key, 7)
    return dict(
        wih0T=u(ks[0], (input_feat, 4 * h)),        # layer 0 W_ih^T
        wihT=u(ks[1], (n_layers - 1, h, 4 * h)),    # layers 1.. W_ih^T (unused by output)
        whhT=u(ks[2], (n_layers, h, 4 * h)),        # W_hh^T
        bih=u(ks[3], (n_layers, 1, 4 * h)),
        bhh=u(ks[4], (n_layers, 1, 4 * h)),
        wlinT=u(ks[5], (h, 1)),                     # lin1 weight^T
        blin=u(ks[6], (1, 1)),                      # lin1 bias
    )


def reference_forward(x, p):
    """Pure-JAX reference of the PyTorch forward (only layer 0 matters)."""
    B, T, F = x.shape
    H = p["whhT"].shape[1]
    wihT, whhT = p["wih0T"], p["whhT"][0]
    b = (p["bih"][0] + p["bhh"][0]).reshape(-1)

    def cell(carry, x_t):
        h, c = carry
        g = x_t @ wihT + h @ whhT + b
        i = jax.nn.sigmoid(g[:, :H])
        f = jax.nn.sigmoid(g[:, H:2 * H])
        gg = jnp.tanh(g[:, 2 * H:3 * H])
        o = jax.nn.sigmoid(g[:, 3 * H:])
        c = f * c + i * gg
        h = o * jnp.tanh(c)
        return (h, c), None

    init = (jnp.zeros((B, H), jnp.float32), jnp.zeros((B, H), jnp.float32))
    (h, _), _ = jax.lax.scan(cell, init, jnp.transpose(x, (1, 0, 2)))
    return (h @ p["wlinT"] + p["blin"]).reshape(-1)


if __name__ == "__main__":
    B, T, F, H = 2, 8, 4, 32  # batch, seq, input_feat, hidden
    key = jax.random.PRNGKey(0)
    kx, kp = jax.random.split(key)
    x = jax.random.normal(kx, (B, T, F), dtype=jnp.float32)
    params = init_params(kp, F, H)

    out = jax.block_until_ready(reg_mod_lstm_forward(x, params))
    ref = jax.block_until_ready(reference_forward(x, params))

    assert out.shape == (B,), out.shape
    assert jnp.allclose(out, ref, atol=1e-5, rtol=1e-5), (out, ref)
    print("KERNEL_OK")
</pallas_src>

<mosaic_0001>
module attributes {stable_mosaic.version = 11 : i64} {
  func.func @_reg_mod_lstm_kernel(%arg0: memref<16x4xf32, #tpu.memory_space<vmem>>, %arg1: memref<4x128xf32, #tpu.memory_space<vmem>>, %arg2: memref<32x128xf32, #tpu.memory_space<vmem>>, %arg3: memref<1x128xf32, #tpu.memory_space<vmem>>, %arg4: memref<1x128xf32, #tpu.memory_space<vmem>>, %arg5: memref<1x32xf32, #tpu.memory_space<vmem>>, %arg6: memref<1x1xf32, #tpu.memory_space<vmem>>, %arg7: memref<2x1xf32, #tpu.memory_space<vmem>>, %arg8: memref<8x2x128xf32, #tpu.memory_space<vmem>>) attributes {dimension_semantics = [], scalar_prefetch = 0 : i64, scratch_operands = 1 : i64, tpu.core_type = #tpu.core_type<tc>} {
    %c0 = arith.constant 0 : index
    %c0_0 = arith.constant 0 : index
    %0 = vector.load %arg3[%c0, %c0_0] : memref<1x128xf32, #tpu.memory_space<vmem>>, vector<1x128xf32>
    %c0_1 = arith.constant 0 : index
    %c0_2 = arith.constant 0 : index
    %1 = vector.load %arg4[%c0_1, %c0_2] : memref<1x128xf32, #tpu.memory_space<vmem>>, vector<1x128xf32>
    %2 = arith.addf %0, %1 : vector<1x128xf32>
    %c0_3 = arith.constant 0 : index
    %c0_4 = arith.constant 0 : index
    %3 = vector.load %arg0[%c0_3, %c0_4] : memref<16x4xf32, #tpu.memory_space<vmem>>, vector<16x4xf32>
    %c0_5 = arith.constant 0 : index
    %c0_6 = arith.constant 0 : index
    %4 = vector.load %arg1[%c0_5, %c0_6] : memref<4x128xf32, #tpu.memory_space<vmem>>, vector<4x128xf32>
    %cst = arith.constant dense<0.000000e+00> : vector<16x128xf32>
    %5 = tpu.matmul %3, %4, %cst {dimension_numbers = #tpu.dot_dimension_numbers<[1], [0], [0], [1], [0, 0, 1, 1], [], []>} : vector<16x4xf32>, vector<4x128xf32>, vector<16x128xf32> -> vector<16x128xf32>
    %6 = vector.broadcast %2 : vector<1x128xf32> to vector<16x128xf32>
    %7 = arith.addf %5, %6 : vector<16x128xf32>
    %8 = vector.extract_strided_slice %7 {offsets = [0, 0], sizes = [2, 128], strides = [1, 1]} : vector<16x128xf32> to vector<2x128xf32>
    %c0_7 = arith.constant 0 : index
    %c0_8 = arith.constant 0 : index
    %c0_9 = arith.constant 0 : index
    %9 = vector.load %arg8[%c0_7, %c0_8, %c0_9] : memref<8x2x128xf32, #tpu.memory_space<vmem>>, vector<1x2x128xf32>
    %10 = vector.shape_cast %9 : vector<1x2x128xf32> to vector<2x128xf32>
    %11 = vector.shape_cast %8 : vector<2x128xf32> to vector<1x2x128xf32>
    tpu.vector_store %arg8[%c0_7, %c0_8, %c0_9], %11 {strides = array<i32>} : memref<8x2x128xf32, #tpu.memory_space<vmem>>, vector<1x2x128xf32>,
    %12 = vector.extract_strided_slice %7 {offsets = [2, 0], sizes = [2, 128], strides = [1, 1]} : vector<16x128xf32> to vector<2x128xf32>
    %c1 = arith.constant 1 : index
    %c0_10 = arith.constant 0 : index
    %c0_11 = arith.constant 0 : index
    %13 = vector.load %arg8[%c1, %c0_10, %c0_11] : memref<8x2x128xf32, #tpu.memory_space<vmem>>, vector<1x2x128xf32>
    %14 = vector.shape_cast %13 : vector<1x2x128xf32> to vector<2x128xf32>
    %15 = vector.shape_cast %12 : vector<2x128xf32> to vector<1x2x128xf32>
    tpu.vector_store %arg8[%c1, %c0_10, %c0_11], %15 {strides = array<i32>} : memref<8x2x128xf32, #tpu.memory_space<vmem>>, vector<1x2x128xf32>,
    %16 = vector.extract_strided_slice %7 {offsets = [4, 0], sizes = [2, 128], strides = [1, 1]} : vector<16x128xf32> to vector<2x128xf32>
    %c2 = arith.constant 2 : index
    %c0_12 = arith.constant 0 : index
    %c0_13 = arith.constant 0 : index
    %17 = vector.load %arg8[%c2, %c0_12, %c0_13] : memref<8x2x128xf32, #tpu.memory_space<vmem>>, vector<1x2x128xf32>
    %18 = vector.shape_cast %17 : vector<1x2x128xf32> to vector<2x128xf32>
    %19 = vector.shape_cast %16 : vector<2x128xf32> to vector<1x2x128xf32>
    tpu.vector_store %arg8[%c2, %c0_12, %c0_13], %19 {strides = array<i32>} : memref<8x2x128xf32, #tpu.memory_space<vmem>>, vector<1x2x128xf32>,
    %20 = vector.extract_strided_slice %7 {offsets = [6, 0], sizes = [2, 128], strides = [1, 1]} : vector<16x128xf32> to vector<2x128xf32>
    %c3 = arith.constant 3 : index
    %c0_14 = arith.constant 0 : index
    %c0_15 = arith.constant 0 : index
    %21 = vector.load %arg8[%c3, %c0_14, %c0_15] : memref<8x2x128xf32, #tpu.memory_space<vmem>>, vector<1x2x128xf32>
    %22 = vector.shape_cast %21 : vector<1x2x128xf32> to vector<2x128xf32>
    %23 = vector.shape_cast %20 : vector<2x128xf32> to vector<1x2x128xf32>
    tpu.vector_store %arg8[%c3, %c0_14, %c0_15], %23 {strides = array<i32>} : memref<8x2x128xf32, #tpu.memory_space<vmem>>, vector<1x2x128xf32>,
    %24 = vector.extract_strided_slice %7 {offsets = [8, 0], sizes = [2, 128], strides = [1, 1]} : vector<16x128xf32> to vector<2x128xf32>
    %c4 = arith.constant 4 : index
    %c0_16 = arith.constant 0 : index
    %c0_17 = arith.constant 0 : index
    %25 = vector.load %arg8[%c4, %c0_16, %c0_17] : memref<8x2x128xf32, #tpu.memory_space<vmem>>, vector<1x2x128xf32>
    %26 = vector.shape_cast %25 : vector<1x2x128xf32> to vector<2x128xf32>
    %27 = vector.shape_cast %24 : vector<2x128xf32> to vector<1x2x128xf32>
    tpu.vector_store %arg8[%c4, %c0_16, %c0_17], %27 {strides = array<i32>} : memref<8x2x128xf32, #tpu.memory_space<vmem>>, vector<1x2x128xf32>,
    %28 = vector.extract_strided_slice %7 {offsets = [10, 0], sizes = [2, 128], strides = [1, 1]} : vector<16x128xf32> to vector<2x128xf32>
    %c5 = arith.constant 5 : index
    %c0_18 = arith.constant 0 : index
    %c0_19 = arith.constant 0 : index
    %29 = vector.load %arg8[%c5, %c0_18, %c0_19] : memref<8x2x128xf32, #tpu.memory_space<vmem>>, vector<1x2x128xf32>
    %30 = vector.shape_cast %29 : vector<1x2x128xf32> to vector<2x128xf32>
    %31 = vector.shape_cast %28 : vector<2x128xf32> to vector<1x2x128xf32>
    tpu.vector_store %arg8[%c5, %c0_18, %c0_19], %31 {strides = array<i32>} : memref<8x2x128xf32, #tpu.memory_space<vmem>>, vector<1x2x128xf32>,
    %32 = vector.extract_strided_slice %7 {offsets = [12, 0], sizes = [2, 128], strides = [1, 1]} : vector<16x128xf32> to vector<2x128xf32>
    %c6 = arith.constant 6 : index
    %c0_20 = arith.constant 0 : index
    %c0_21 = arith.constant 0 : index
    %33 = vector.load %arg8[%c6, %c0_20, %c0_21] : memref<8x2x128xf32, #tpu.memory_space<vmem>>, vector<1x2x128xf32>
    %34 = vector.shape_cast %33 : vector<1x2x128xf32> to vector<2x128xf32>
    %35 = vector.shape_cast %32 : vector<2x128xf32> to vector<1x2x128xf32>
    tpu.vector_store %arg8[%c6, %c0_20, %c0_21], %35 {strides = array<i32>} : memref<8x2x128xf32, #tpu.memory_space<vmem>>, vector<1x2x128xf32>,
    %36 = vector.extract_strided_slice %7 {offsets = [14, 0], sizes = [2, 128], strides = [1, 1]} : vector<16x128xf32> to vector<2x128xf32>
    %c7 = arith.constant 7 : index
    %c0_22 = arith.constant 0 : index
    %c0_23 = arith.constant 0 : index
    %37 = vector.load %arg8[%c7, %c0_22, %c0_23] : memref<8x2x128xf32, #tpu.memory_space<vmem>>, vector<1x2x128xf32>
    %38 = vector.shape_cast %37 : vector<1x2x128xf32> to vector<2x128xf32>
    %39 = vector.shape_cast %36 : vector<2x128xf32> to vector<1x2x128xf32>
    tpu.vector_store %arg8[%c7, %c0_22, %c0_23], %39 {strides = array<i32>} : memref<8x2x128xf32, #tpu.memory_space<vmem>>, vector<1x2x128xf32>,
    %c0_24 = arith.constant 0 : index
    %c0_25 = arith.constant 0 : index
    %40 = vector.load %arg2[%c0_24, %c0_25] : memref<32x128xf32, #tpu.memory_space<vmem>>, vector<32x128xf32>
    %41 = tpu.iota {dimensions = array<i32: 1>} : vector<2x128xi32>
    %c64_i32 = arith.constant 64 : i32
    %42 = vector.broadcast %c64_i32 : i32 to vector<2x128xi32>
    %43 = arith.cmpi sge, %41, %42 : vector<2x128xi32>
    %c96_i32 = arith.constant 96 : i32
    %44 = vector.broadcast %c96_i32 : i32 to vector<2x128xi32>
    %45 = arith.cmpi slt, %41, %44 : vector<2x128xi32>
    %46 = arith.andi %43, %45 : vector<2x128xi1>
    %cst_26 = arith.constant 2.000000e+00 : f32
    %cst_27 = arith.constant 1.000000e+00 : f32
    %47 = vector.broadcast %cst_26 : f32 to vector<2x128xf32>
    %48 = vector.broadcast %cst_27 : f32 to vector<2x128xf32>
    %49 = arith.select %46, %47, %48 : vector<2x128xi1>, vector<2x128xf32>
    %cst_28 = arith.constant 1.000000e+00 : f32
    %50 = vector.broadcast %cst_28 : f32 to vector<2x128xf32>
    %51 = arith.subf %49, %50 : vector<2x128xf32>
    %cst_29 = arith.constant 0.000000e+00 : f32
    %52 = vector.broadcast %cst_29 : f32 to vector<2x32xf32>
    %cst_30 = arith.constant 0.000000e+00 : f32
    %53 = vector.broadcast %cst_30 : f32 to vector<2x32xf32>
    %c0_i32 = arith.constant 0 : i32
    %54 = arith.index_cast %c0_i32 : i32 to index
    %c0_31 = arith.constant 0 : index
    %c0_32 = arith.constant 0 : index
    %55 = vector.load %arg8[%54, %c0_31, %c0_32] : memref<8x2x128xf32, #tpu.memory_space<vmem>>, vector<1x2x128xf32>
    %56 = vector.shape_cast %55 : vector<1x2x128xf32> to vector<2x128xf32>
    %cst_33 = arith.constant dense<0.000000e+00> : vector<2x128xf32>
    %57 = tpu.matmul %52, %40, %cst_33 {dimension_numbers = #tpu.dot_dimension_numbers<[1], [0], [0], [1], [0, 0, 1, 1], [], []>} : vector<2x32xf32>, vector<32x128xf32>, vector<2x128xf32> -> vector<2x128xf32>
    %58 = arith.addf %56, %57 : vector<2x128xf32>
    %59 = arith.mulf %49, %58 : vector<2x128xf32>
    %60 = arith.negf %59 : vector<2x128xf32>
    %61 = math.exp %60 : vector<2x128xf32>
    %cst_34 = arith.constant 1.000000e+00 : f32
    %62 = vector.broadcast %cst_34 : f32 to vector<2x128xf32>
    %63 = arith.addf %62, %61 : vector<2x128xf32>
    %64 = arith.divf %62, %63 : vector<2x128xf32>
    %65 = arith.mulf %49, %64 : vector<2x128xf32>
    %66 = arith.subf %65, %51 : vector<2x128xf32>
    %67 = vector.extract_strided_slice %66 {offsets = [0, 0], sizes = [2, 32], strides = [1, 1]} : vector<2x128xf32> to vector<2x32xf32>
    %68 = vector.extract_strided_slice %66 {offsets = [0, 32], sizes = [2, 32], strides = [1, 1]} : vector<2x128xf32> to vector<2x32xf32>
    %69 = vector.extract_strided_slice %66 {offsets = [0, 64], sizes = [2, 32], strides = [1, 1]} : vector<2x128xf32> to vector<2x32xf32>
    %70 = vector.extract_strided_slice %66 {offsets = [0, 96], sizes = [2, 32], strides = [1, 1]} : vector<2x128xf32> to vector<2x32xf32>
    %71 = arith.mulf %68, %53 : vector<2x32xf32>
    %72 = arith.mulf %67, %69 : vector<2x32xf32>
    %73 = arith.addf %71, %72 : vector<2x32xf32>
    %74 = math.tanh %73 : vector<2x32xf32>
    %75 = arith.mulf %70, %74 : vector<2x32xf32>
    %c1_i32 = arith.constant 1 : i32
    %76 = arith.index_cast %c1_i32 : i32 to index
    %c0_35 = arith.constant 0 : index
    %c0_36 = arith.constant 0 : index
    %77 = vector.load %arg8[%76, %c0_35, %c0_36] : memref<8x2x128xf32, #tpu.memory_space<vmem>>, vector<1x2x128xf32>
    %78 = vector.shape_cast %77 : vector<1x2x128xf32> to vector<2x128xf32>
    %cst_37 = arith.constant dense<0.000000e+00> : vector<2x128xf32>
    %79 = tpu.matmul %75, %40, %cst_37 {dimension_numbers = #tpu.dot_dimension_numbers<[1], [0], [0], [1], [0, 0, 1, 1], [], []>} : vector<2x32xf32>, vector<32x128xf32>, vector<2x128xf32> -> vector<2x128xf32>
    %80 = arith.addf %78, %79 : vector<2x128xf32>
    %81 = arith.mulf %49, %80 : vector<2x128xf32>
    %82 = arith.negf %81 : vector<2x128xf32>
    %83 = math.exp %82 : vector<2x128xf32>
    %cst_38 = arith.constant 1.000000e+00 : f32
    %84 = vector.broadcast %cst_38 : f32 to vector<2x128xf32>
    %85 = arith.addf %84, %83 : vector<2x128xf32>
    %86 = arith.divf %84, %85 : vector<2x128xf32>
    %87 = arith.mulf %49, %86 : vector<2x128xf32>
    %88 = arith.subf %87, %51 : vector<2x128xf32>
    %89 = vector.extract_strided_slice %88 {offsets = [0, 0], sizes = [2, 32], strides = [1, 1]} : vector<2x128xf32> to vector<2x32xf32>
    %90 = vector.extract_strided_slice %88 {offsets = [0, 32], sizes = [2, 32], strides = [1, 1]} : vector<2x128xf32> to vector<2x32xf32>
    %91 = vector.extract_strided_slice %88 {offsets = [0, 64], sizes = [2, 32], strides = [1, 1]} : vector<2x128xf32> to vector<2x32xf32>
    %92 = vector.extract_strided_slice %88 {offsets = [0, 96], sizes = [2, 32], strides = [1, 1]} : vector<2x128xf32> to vector<2x32xf32>
    %93 = arith.mulf %90, %73 : vector<2x32xf32>
    %94 = arith.mulf %89, %91 : vector<2x32xf32>
    %95 = arith.addf %93, %94 : vector<2x32xf32>
    %96 = math.tanh %95 : vector<2x32xf32>
    %97 = arith.mulf %92, %96 : vector<2x32xf32>
    %c2_i32 = arith.constant 2 : i32
    %98 = arith.index_cast %c2_i32 : i32 to index
    %c0_39 = arith.constant 0 : index
    %c0_40 = arith.constant 0 : index
    %99 = vector.load %arg8[%98, %c0_39, %c0_40] : memref<8x2x128xf32, #tpu.memory_space<vmem>>, vector<1x2x128xf32>
    %100 = vector.shape_cast %99 : vector<1x2x128xf32> to vector<2x128xf32>
    %cst_41 = arith.constant dense<0.000000e+00> : vector<2x128xf32>
    %101 = tpu.matmul %97, %40, %cst_41 {dimension_numbers = #tpu.dot_dimension_numbers<[1], [0], [0], [1], [0, 0, 1, 1], [], []>} : vector<2x32xf32>, vector<32x128xf32>, vector<2x128xf32> -> vector<2x128xf32>
    %102 = arith.addf %100, %101 : vector<2x128xf32>
    %103 = arith.mulf %49, %102 : vector<2x128xf32>
    %104 = arith.negf %103 : vector<2x128xf32>
    %105 = math.exp %104 : vector<2x128xf32>
    %cst_42 = arith.constant 1.000000e+00 : f32
    %106 = vector.broadcast %cst_42 : f32 to vector<2x128xf32>
    %107 = arith.addf %106, %105 : vector<2x128xf32>
    %108 = arith.divf %106, %107 : vector<2x128xf32>
    %109 = arith.mulf %49, %108 : vector<2x128xf32>
    %110 = arith.subf %109, %51 : vector<2x128xf32>
    %111 = vector.extract_strided_slice %110 {offsets = [0, 0], sizes = [2, 32], strides = [1, 1]} : vector<2x128xf32> to vector<2x32xf32>
    %112 = vector.extract_strided_slice %110 {offsets = [0, 32], sizes = [2, 32], strides = [1, 1]} : vector<2x128xf32> to vector<2x32xf32>
    %113 = vector.extract_strided_slice %110 {offsets = [0, 64], sizes = [2, 32], strides = [1, 1]} : vector<2x128xf32> to vector<2x32xf32>
    %114 = vector.extract_strided_slice %110 {offsets = [0, 96], sizes = [2, 32], strides = [1, 1]} : vector<2x128xf32> to vector<2x32xf32>
    %115 = arith.mulf %112, %95 : vector<2x32xf32>
    %116 = arith.mulf %111, %113 : vector<2x32xf32>
    %117 = arith.addf %115, %116 : vector<2x32xf32>
    %118 = math.tanh %117 : vector<2x32xf32>
    %119 = arith.mulf %114, %118 : vector<2x32xf32>
    %c3_i32 = arith.constant 3 : i32
    %120 = arith.index_cast %c3_i32 : i32 to index
    %c0_43 = arith.constant 0 : index
    %c0_44 = arith.constant 0 : index
    %121 = vector.load %arg8[%120, %c0_43, %c0_44] : memref<8x2x128xf32, #tpu.memory_space<vmem>>, vector<1x2x128xf32>
    %122 = vector.shape_cast %121 : vector<1x2x128xf32> to vector<2x128xf32>
    %cst_45 = arith.constant dense<0.000000e+00> : vector<2x128xf32>
    %123 = tpu.matmul %119, %40, %cst_45 {dimension_numbers = #tpu.dot_dimension_numbers<[1], [0], [0], [1], [0, 0, 1, 1], [], []>} : vector<2x32xf32>, vector<32x128xf32>, vector<2x128xf32> -> vector<2x128xf32>
    %124 = arith.addf %122, %123 : vector<2x128xf32>
    %125 = arith.mulf %49, %124 : vector<2x128xf32>
    %126 = arith.negf %125 : vector<2x128xf32>
    %127 = math.exp %126 : vector<2x128xf32>
    %cst_46 = arith.constant 1.000000e+00 : f32
    %128 = vector.broadcast %cst_46 : f32 to vector<2x128xf32>
    %129 = arith.addf %128, %127 : vector<2x128xf32>
    %130 = arith.divf %128, %129 : vector<2x128xf32>
    %131 = arith.mulf %49, %130 : vector<2x128xf32>
    %132 = arith.subf %131, %51 : vector<2x128xf32>
    %133 = vector.extract_strided_slice %132 {offsets = [0, 0], sizes = [2, 32], strides = [1, 1]} : vector<2x128xf32> to vector<2x32xf32>
    %134 = vector.extract_strided_slice %132 {offsets = [0, 32], sizes = [2, 32], strides = [1, 1]} : vector<2x128xf32> to vector<2x32xf32>
    %135 = vector.extract_strided_slice %132 {offsets = [0, 64], sizes = [2, 32], strides = [1, 1]} : vector<2x128xf32> to vector<2x32xf32>
    %136 = vector.extract_strided_slice %132 {offsets = [0, 96], sizes = [2, 32], strides = [1, 1]} : vector<2x128xf32> to vector<2x32xf32>
    %137 = arith.mulf %134, %117 : vector<2x32xf32>
    %138 = arith.mulf %133, %135 : vector<2x32xf32>
    %139 = arith.addf %137, %138 : vector<2x32xf32>
    %140 = math.tanh %139 : vector<2x32xf32>
    %141 = arith.mulf %136, %140 : vector<2x32xf32>
    %c4_i32 = arith.constant 4 : i32
    %142 = arith.index_cast %c4_i32 : i32 to index
    %c0_47 = arith.constant 0 : index
    %c0_48 = arith.constant 0 : index
    %143 = vector.load %arg8[%142, %c0_47, %c0_48] : memref<8x2x128xf32, #tpu.memory_space<vmem>>, vector<1x2x128xf32>
    %144 = vector.shape_cast %143 : vector<1x2x128xf32> to vector<2x128xf32>
    %cst_49 = arith.constant dense<0.000000e+00> : vector<2x128xf32>
    %145 = tpu.matmul %141, %40, %cst_49 {dimension_numbers = #tpu.dot_dimension_numbers<[1], [0], [0], [1], [0, 0, 1, 1], [], []>} : vector<2x32xf32>, vector<32x128xf32>, vector<2x128xf32> -> vector<2x128xf32>
    %146 = arith.addf %144, %145 : vector<2x128xf32>
    %147 = arith.mulf %49, %146 : vector<2x128xf32>
    %148 = arith.negf %147 : vector<2x128xf32>
    %149 = math.exp %148 : vector<2x128xf32>
    %cst_50 = arith.constant 1.000000e+00 : f32
    %150 = vector.broadcast %cst_50 : f32 to vector<2x128xf32>
    %151 = arith.addf %150, %149 : vector<2x128xf32>
    %152 = arith.divf %150, %151 : vector<2x128xf32>
    %153 = arith.mulf %49, %152 : vector<2x128xf32>
    %154 = arith.subf %153, %51 : vector<2x128xf32>
    %155 = vector.extract_strided_slice %154 {offsets = [0, 0], sizes = [2, 32], strides = [1, 1]} : vector<2x128xf32> to vector<2x32xf32>
    %156 = vector.extract_strided_slice %154 {offsets = [0, 32], sizes = [2, 32], strides = [1, 1]} : vector<2x128xf32> to vector<2x32xf32>
    %157 = vector.extract_strided_slice %154 {offsets = [0, 64], sizes = [2, 32], strides = [1, 1]} : vector<2x128xf32> to vector<2x32xf32>
    %158 = vector.extract_strided_slice %154 {offsets = [0, 96], sizes = [2, 32], strides = [1, 1]} : vector<2x128xf32> to vector<2x32xf32>
    %159 = arith.mulf %156, %139 : vector<2x32xf32>
    %160 = arith.mulf %155, %157 : vector<2x32xf32>
    %161 = arith.addf %159, %160 : vector<2x32xf32>
    %162 = math.tanh %161 : vector<2x32xf32>
    %163 = arith.mulf %158, %162 : vector<2x32xf32>
    %c5_i32 = arith.constant 5 : i32
    %164 = arith.index_cast %c5_i32 : i32 to index
    %c0_51 = arith.constant 0 : index
    %c0_52 = arith.constant 0 : index
    %165 = vector.load %arg8[%164, %c0_51, %c0_52] : memref<8x2x128xf32, #tpu.memory_space<vmem>>, vector<1x2x128xf32>
    %166 = vector.shape_cast %165 : vector<1x2x128xf32> to vector<2x128xf32>
    %cst_53 = arith.constant dense<0.000000e+00> : vector<2x128xf32>
    %167 = tpu.matmul %163, %40, %cst_53 {dimension_numbers = #tpu.dot_dimension_numbers<[1], [0], [0], [1], [0, 0, 1, 1], [], []>} : vector<2x32xf32>, vector<32x128xf32>, vector<2x128xf32> -> vector<2x128xf32>
    %168 = arith.addf %166, %167 : vector<2x128xf32>
    %169 = arith.mulf %49, %168 : vector<2x128xf32>
    %170 = arith.negf %169 : vector<2x128xf32>
    %171 = math.exp %170 : vector<2x128xf32>
    %cst_54 = arith.constant 1.000000e+00 : f32
    %172 = vector.broadcast %cst_54 : f32 to vector<2x128xf32>
    %173 = arith.addf %172, %171 : vector<2x128xf32>
    %174 = arith.divf %172, %173 : vector<2x128xf32>
    %175 = arith.mulf %49, %174 : vector<2x128xf32>
    %176 = arith.subf %175, %51 : vector<2x128xf32>
    %177 = vector.extract_strided_slice %176 {offsets = [0, 0], sizes = [2, 32], strides = [1, 1]} : vector<2x128xf32> to vector<2x32xf32>
    %178 = vector.extract_strided_slice %176 {offsets = [0, 32], sizes = [2, 32], strides = [1, 1]} : vector<2x128xf32> to vector<2x32xf32>
    %179 = vector.extract_strided_slice %176 {offsets = [0, 64], sizes = [2, 32], strides = [1, 1]} : vector<2x128xf32> to vector<2x32xf32>
    %180 = vector.extract_strided_slice %176 {offsets = [0, 96], sizes = [2, 32], strides = [1, 1]} : vector<2x128xf32> to vector<2x32xf32>
    %181 = arith.mulf %178, %161 : vector<2x32xf32>
    %182 = arith.mulf %177, %179 : vector<2x32xf32>
    %183 = arith.addf %181, %182 : vector<2x32xf32>
    %184 = math.tanh %183 : vector<2x32xf32>
    %185 = arith.mulf %180, %184 : vector<2x32xf32>
    %c6_i32 = arith.constant 6 : i32
    %186 = arith.index_cast %c6_i32 : i32 to index
    %c0_55 = arith.constant 0 : index
    %c0_56 = arith.constant 0 : index
    %187 = vector.load %arg8[%186, %c0_55, %c0_56] : memref<8x2x128xf32, #tpu.memory_space<vmem>>, vector<1x2x128xf32>
    %188 = vector.shape_cast %187 : vector<1x2x128xf32> to vector<2x128xf32>
    %cst_57 = arith.constant dense<0.000000e+00> : vector<2x128xf32>
    %189 = tpu.matmul %185, %40, %cst_57 {dimension_numbers = #tpu.dot_dimension_numbers<[1], [0], [0], [1], [0, 0, 1, 1], [], []>} : vector<2x32xf32>, vector<32x128xf32>, vector<2x128xf32> -> vector<2x128xf32>
    %190 = arith.addf %188, %189 : vector<2x128xf32>
    %191 = arith.mulf %49, %190 : vector<2x128xf32>
    %192 = arith.negf %191 : vector<2x128xf32>
    %193 = math.exp %192 : vector<2x128xf32>
    %cst_58 = arith.constant 1.000000e+00 : f32
    %194 = vector.broadcast %cst_58 : f32 to vector<2x128xf32>
    %195 = arith.addf %194, %193 : vector<2x128xf32>
    %196 = arith.divf %194, %195 : vector<2x128xf32>
    %197 = arith.mulf %49, %196 : vector<2x128xf32>
    %198 = arith.subf %197, %51 : vector<2x128xf32>
    %199 = vector.extract_strided_slice %198 {offsets = [0, 0], sizes = [2, 32], strides = [1, 1]} : vector<2x128xf32> to vector<2x32xf32>
    %200 = vector.extract_strided_slice %198 {offsets = [0, 32], sizes = [2, 32], strides = [1, 1]} : vector<2x128xf32> to vector<2x32xf32>
    %201 = vector.extract_strided_slice %198 {offsets = [0, 64], sizes = [2, 32], strides = [1, 1]} : vector<2x128xf32> to vector<2x32xf32>
    %202 = vector.extract_strided_slice %198 {offsets = [0, 96], sizes = [2, 32], strides = [1, 1]} : vector<2x128xf32> to vector<2x32xf32>
    %203 = arith.mulf %200, %183 : vector<2x32xf32>
    %204 = arith.mulf %199, %201 : vector<2x32xf32>
    %205 = arith.addf %203, %204 : vector<2x32xf32>
    %206 = math.tanh %205 : vector<2x32xf32>
    %207 = arith.mulf %202, %206 : vector<2x32xf32>
    %c7_i32 = arith.constant 7 : i32
    %208 = arith.index_cast %c7_i32 : i32 to index
    %c0_59 = arith.constant 0 : index
    %c0_60 = arith.constant 0 : index
    %209 = vector.load %arg8[%208, %c0_59, %c0_60] : memref<8x2x128xf32, #tpu.memory_space<vmem>>, vector<1x2x128xf32>
    %210 = vector.shape_cast %209 : vector<1x2x128xf32> to vector<2x128xf32>
    %cst_61 = arith.constant dense<0.000000e+00> : vector<2x128xf32>
    %211 = tpu.matmul %207, %40, %cst_61 {dimension_numbers = #tpu.dot_dimension_numbers<[1], [0], [0], [1], [0, 0, 1, 1], [], []>} : vector<2x32xf32>, vector<32x128xf32>, vector<2x128xf32> -> vector<2x128xf32>
    %212 = arith.addf %210, %211 : vector<2x128xf32>
    %213 = arith.mulf %49, %212 : vector<2x128xf32>
    %214 = arith.negf %213 : vector<2x128xf32>
    %215 = math.exp %214 : vector<2x128xf32>
    %cst_62 = arith.constant 1.000000e+00 : f32
    %216 = vector.broadcast %cst_62 : f32 to vector<2x128xf32>
    %217 = arith.addf %216, %215 : vector<2x128xf32>
    %218 = arith.divf %216, %217 : vector<2x128xf32>
    %219 = arith.mulf %49, %218 : vector<2x128xf32>
    %220 = arith.subf %219, %51 : vector<2x128xf32>
    %221 = vector.extract_strided_slice %220 {offsets = [0, 0], sizes = [2, 32], strides = [1, 1]} : vector<2x128xf32> to vector<2x32xf32>
    %222 = vector.extract_strided_slice %220 {offsets = [0, 32], sizes = [2, 32], strides = [1, 1]} : vector<2x128xf32> to vector<2x32xf32>
    %223 = vector.extract_strided_slice %220 {offsets = [0, 64], sizes = [2, 32], strides = [1, 1]} : vector<2x128xf32> to vector<2x32xf32>
    %224 = vector.extract_strided_slice %220 {offsets = [0, 96], sizes = [2, 32], strides = [1, 1]} : vector<2x128xf32> to vector<2x32xf32>
    %225 = arith.mulf %222, %205 : vector<2x32xf32>
    %226 = arith.mulf %221, %223 : vector<2x32xf32>
    %227 = arith.addf %225, %226 : vector<2x32xf32>
    %228 = math.tanh %227 : vector<2x32xf32>
    %229 = arith.mulf %224, %228 : vector<2x32xf32>
    %c8_i32 = arith.constant 8 : i32
    %c0_63 = arith.constant 0 : index
    %c0_64 = arith.constant 0 : index
    %230 = vector.load %arg5[%c0_63, %c0_64] : memref<1x32xf32, #tpu.memory_space<vmem>>, vector<1x32xf32>
    %231 = vector.broadcast %230 : vector<1x32xf32> to vector<2x32xf32>
    %232 = arith.mulf %229, %231 : vector<2x32xf32>
    %cst_65 = arith.constant dense<0.000000e+00> : vector<2xf32>
    %233 = vector.multi_reduction <add>, %232, %cst_65 [1] : vector<2x32xf32> to vector<2xf32>
    %234 = vector.shape_cast %233 : vector<2xf32> to vector<2x1xf32>
    %c0_66 = arith.constant 0 : index
    %c0_67 = arith.constant 0 : index
    %235 = vector.load %arg6[%c0_66, %c0_67] : memref<1x1xf32, #tpu.memory_space<vmem>>, vector<1x1xf32>
    %236 = vector.broadcast %235 : vector<1x1xf32> to vector<2x1xf32>
    %237 = arith.addf %234, %236 : vector<2x1xf32>
    %c0_68 = arith.constant 0 : index
    %c0_69 = arith.constant 0 : index
    %238 = vector.load %arg7[%c0_68, %c0_69] : memref<2x1xf32, #tpu.memory_space<vmem>>, vector<2x1xf32>
    tpu.vector_store %arg7[%c0_68, %c0_69], %237 {strides = array<i32>} : memref<2x1xf32, #tpu.memory_space<vmem>>, vector<2x1xf32>,
    return
  }
}

</mosaic_0001>

<llo_original>
// kernel: tpu_custom_call.1
$region0: #{tpu_custom_call.1}
  #allocation0 [shape = 'u32[]', space=smem, size = 0x4, offset = 0x4, fixed_abs, tag = 'smem constant byte address 0x4 - core index']
  #allocation1 [shape = 'u32[144,128]{1,0:T(1,128)}', space=vmem, size = 0x12000, scoped, tag = 'internal scratch']
  #allocation2 [shape = 'f32[8,2,128]{2,1,0:T(2,128)}', space=vmem, size = 0x2000, scoped, tag = 'scratch operand']
  #allocation3 [shape = 'f32[1,1]{1,0:T(1,128)S(1)}', space=vmem, size = 0x200, scoped, tag = 'scoped memory for tpu_custom_call.1']
  %s0 = inlined_call_operand.vmem [shape: f32[16,4], index: 0, kind: input, shape index: {}]
  %s1 = inlined_call_operand.vmem [shape: f32[4,128], index: 1, kind: input, shape index: {}]
  %s2 = inlined_call_operand.hbm [shape: f32[32,128], index: 2, kind: input, shape index: {}]
  %s3 = inlined_call_operand.vmem [shape: f32[1,128], index: 3, kind: input, shape index: {}]
  %s4 = inlined_call_operand.vmem [shape: f32[1,128], index: 4, kind: input, shape index: {}]
  %s5 = inlined_call_operand.vmem [shape: f32[1,32], index: 5, kind: input, shape index: {}]
  %s6 = inlined_call_operand.<no memory space> [shape: f32[1,1], index: 6, kind: input, shape index: {}]
  %s7 = inlined_call_operand.vmem [shape: f32[2,1], index: 7, kind: output, shape index: {}]
  %s8 = sld [smem:[#allocation0]]
  $region42: #{tpu_custom_call.1} parent=0
    _
  %s10 = ssub.s32 1, %s8
  %s11 = scalar_select 0, %s10, %s8
  %v12 = vstv %s6
  %13 = vst [vmem:[#allocation3] sm:$0x1] %v12
  $region1: #{tpu_custom_call.1} parent=0
    #allocation4 [shape = 'u8[16384]{0}', space=vmem, size = 0x4000, scoped, tag = 'input window, operand 2, single buffered']
    #allocation5 [shape = 's32[1]{0}', space=sflag, size = 0x4, scoped, tag = 'scoped memory for tpu_custom_call.1']
    %14 = vsyncpa [#allocation5], 0
    // Predicated region
    $region2: #{tpu_custom_call.1} parent=1 // pred_check
      _
    $region3: #{tpu_custom_call.1} parent=1 // pred_check_branch
      %16 = sbr.rel (0) target = $region5
    $region4: #{tpu_custom_call.1} parent=1 // pred_region
      _
    $region5: #{tpu_custom_call.1} parent=1 // pred_fallthru
      _
    // Predicated region
    $region6: #{tpu_custom_call.1} parent=1 // pred_check
      _
    $region7: #{tpu_custom_call.1} parent=1 // pred_check_branch
      %18 = sbr.rel (0) target = $region9
    $region8: #{tpu_custom_call.1} parent=1 // pred_region
      _
    $region9: #{tpu_custom_call.1} parent=1 // pred_fallthru
      _
    // Predicated region
    $region10: #{tpu_custom_call.1} parent=1 // pred_check
      _
    $region11: #{tpu_custom_call.1} parent=1 // pred_check_branch
      %20 = sbr.rel (0) target = $region13
    $region12: #{tpu_custom_call.1} parent=1 // pred_region
      %s22 = ssub.s32 512, 512
      %23 = vsyncadd [#allocation5], %s22
      %s24 = sshll.u32 [#allocation4], 4
      %s25 = int_to_ptr.vmem [resolvable:$true] %s24
      %30 = dma.hbm_to_vmem [thread:$0]  %s2, 512, %s25, [#allocation5], 128, 128, 8
    $region13: #{tpu_custom_call.1} parent=1 // pred_fallthru
      _
    // Predicated region
    $region14: #{tpu_custom_call.1} parent=1 // pred_check
      _
    $region15: #{tpu_custom_call.1} parent=1 // pred_check_branch
      %32 = sbr.rel (0) target = $region17
    $region16: #{tpu_custom_call.1} parent=1 // pred_region
      _
    $region17: #{tpu_custom_call.1} parent=1 // pred_fallthru
      _
    // Predicated region
    $region18: #{tpu_custom_call.1} parent=1 // pred_check
      _
    $region19: #{tpu_custom_call.1} parent=1 // pred_check_branch
      %34 = sbr.rel (0) target = $region21
    $region20: #{tpu_custom_call.1} parent=1 // pred_region
      _
    $region21: #{tpu_custom_call.1} parent=1 // pred_fallthru
      _
    // Predicated region
    $region22: #{tpu_custom_call.1} parent=1 // pred_check
      _
    $region23: #{tpu_custom_call.1} parent=1 // pred_check_branch
      %36 = sbr.rel (0) target = $region25
    $region24: #{tpu_custom_call.1} parent=1 // pred_region
      _
    $region25: #{tpu_custom_call.1} parent=1 // pred_fallthru
      _
    // Predicated region
    $region26: #{tpu_custom_call.1} parent=1 // pred_check
      _
    $region27: #{tpu_custom_call.1} parent=1 // pred_check_branch
      %38 = sbr.rel (0) target = $region29
    $region28: #{tpu_custom_call.1} parent=1 // pred_region
      _
    $region29: #{tpu_custom_call.1} parent=1 // pred_fallthru
      _
    // Predicated region
    $region30: #{tpu_custom_call.1} parent=1 // pred_check
      _
    $region31: #{tpu_custom_call.1} parent=1 // pred_check_branch
      %40 = sbr.rel (0) target = $region33
    $region32: #{tpu_custom_call.1} parent=1 // pred_region
      %41 = dma.done [#allocation5], 512
    $region33: #{tpu_custom_call.1} parent=1 // pred_fallthru
      _
    %v42 = vld [vmem:[%s3] sm:$0x1]
    %v43 = vld [vmem:[%s4] sm:$0x1]
    %v44 = vadd.f32 %v42, %v43
    %v45 = vld [vmem:[%s0] sm:$0xff]
    %v46 = vld [vmem:[%s0 + $0x8] sm:$0xff]
    %v47 = vld [vmem:[%s1] sm:$0xf]
    %v49 = vlaneseq
    %v50 = vshrl.u32 %v49, 7
    %v51 = vsub.s32 0, %v50
    %v52 = vrot.slane %v44, %v51
    %vm54 = vcmask 31744
    %v56 = vsel %vm54, %v45, 0
    %v59 = vsel %vm54, %v46, 0
    %vm61 = vcmask 1043456
    %v63 = vsel %vm61, %v47, 0
    %65 = vmatprep.subr.mxu0 0.0
    %66 = vmatpush1.msra.mxu0 %v63
    %67 = vmatprep.subr.mxu0 0.0
    %68 = vmatpush1.msra.mxu0 0.0
    %69 = vmatprep.subr.mxu0 0.0
    %70 = vmatpush1.msra.mxu0 0.0
    %71 = vmatprep.subr.mxu0 0.0
    %72 = vmatpush1.msra.mxu0 0.0
    %73 = vmatprep.subr.mxu0 0.0
    %74 = vmatpush1.msra.mxu0 0.0
    %75 = vmatprep.subr.mxu0 0.0
    %76 = vmatpush1.msra.mxu0 0.0
    %77 = vmatprep.subr.mxu0 0.0
    %78 = vmatpush1.msra.mxu0 0.0
    %79 = vmatprep.subr.mxu0 0.0
    %80 = vmatpush1.msra.mxu0 0.0
    %81 = vmatprep.subr.mxu0 0.0
    %82 = vmatpush1.msra.mxu0 0.0
    %83 = vmatprep.subr.mxu0 0.0
    %84 = vmatpush1.msra.mxu0 0.0
    %85 = vmatprep.subr.mxu0 0.0
    %86 = vmatpush1.msra.mxu0 0.0
    %87 = vmatprep.subr.mxu0 0.0
    %88 = vmatpush1.msra.mxu0 0.0
    %89 = vmatprep.subr.mxu0 0.0
    %90 = vmatpush1.msra.mxu0 0.0
    %91 = vmatprep.subr.mxu0 0.0
    %92 = vmatpush1.msra.mxu0 0.0
    %93 = vmatprep.subr.mxu0 0.0
    %94 = vmatpush1.msra.mxu0 0.0
    %95 = vmatprep.subr.mxu0 0.0
    %96 = vmatpush1.msra.mxu0 0.0
    %97 = vmatprep.subr.mxu0 0.0
    %98 = vmatpush1.msra.mxu0 0.0
    %99 = vmatprep.subr.mxu0 0.0
    %100 = vmatpush1.msra.mxu0 0.0
    %101 = vmatprep.subr.mxu0 0.0
    %102 = vmatpush1.msra.mxu0 0.0
    %103 = vmatprep.subr.mxu0 0.0
    %104 = vmatpush1.msra.mxu0 0.0
    %105 = vmatprep.subr.mxu0 0.0
    %106 = vmatpush1.msra.mxu0 0.0
    %107 = vmatprep.subr.mxu0 0.0
    %108 = vmatpush1.msra.mxu0 0.0
    %109 = vmatprep.subr.mxu0 0.0
    %110 = vmatpush1.msra.mxu0 0.0
    %111 = vmatprep.subr.mxu0 0.0
    %112 = vmatpush1.msra.mxu0 0.0
    %113 = vmatprep.subr.mxu0 0.0
    %114 = vmatpush1.msra.mxu0 0.0
    %115 = vmatprep.subr.mxu0 0.0
    %116 = vmatpush1.msra.mxu0 0.0
    %117 = vmatprep.subr.mxu0 0.0
    %118 = vmatpush1.msra.mxu0 0.0
    %119 = vmatprep.subr.mxu0 0.0
    %120 = vmatpush1.msra.mxu0 0.0
    %121 = vmatprep.subr.mxu0 0.0
    %122 = vmatpush1.msra.mxu0 0.0
    %123 = vmatprep.subr.mxu0 0.0
    %124 = vmatpush1.msra.mxu0 0.0
    %125 = vmatprep.subr.mxu0 0.0
    %126 = vmatpush1.msra.mxu0 0.0
    %127 = vmatprep.subr.mxu0 0.0
    %128 = vmatpush1.msra.mxu0 0.0
    %129 = vmatprep.mubr.f32.mxu0 0.0
    %130 = vmatmul.mubr.f32.gmra.mrb[0].mxu0 %v56
    %v131 = vpop.f32.mrb[0].mxu0
    %v132 = vadd.f32 %v52, %v131
    %v133 = vpop.f32.mrb[0].mxu0
    %134 = vmatprep.mubr.f32.mxu0 0.0
    %135 = vmatmul.mubr.f32.gmra.mrb[0].mxu0 %v59
    %v136 = vpop.f32.mrb[0].mxu0
    %v137 = vadd.f32 %v52, %v136
    %v138 = vpop.f32.mrb[0].mxu0
    %139 = vdwg.mxu0
    %140 = vst [vmem:[#allocation2] sm:$0x3] %v132
    %s141 = scalar_lea.vmem [#allocation2], 2
    %142 = vst [vmem:[%s141 - $0x2] sm:$0xc] %v132
    %s143 = scalar_lea.vmem [#allocation2], 4
    %144 = vst [vmem:[%s143 - $0x4] sm:$0x30] %v132
    %s145 = scalar_lea.vmem [#allocation2], 6
    %146 = vst [vmem:[%s145 - $0x6] sm:$0xc0] %v132
    %s147 = scalar_lea.vmem [#allocation2], 8
    %148 = vst [vmem:[%s147] sm:$0x3] %v137
    %s149 = scalar_lea.vmem [#allocation2], 10
    %150 = vst [vmem:[%s149 - $0x2] sm:$0xc] %v137
    %s151 = scalar_lea.vmem [#allocation2], 12
    %152 = vst [vmem:[%s151 - $0x4] sm:$0x30] %v137
    %s153 = scalar_lea.vmem [#allocation2], 14
    %154 = vst [vmem:[%s153 - $0x6] sm:$0xc0] %v137
    %v155 = vld [vmem:[#allocation4] sm:$0xff]
    %v156 = vld [vmem:[#allocation4 + $0x8] sm:$0xff]
    %v157 = vld [vmem:[#allocation4 + $0x10] sm:$0xff]
    %v158 = vld [vmem:[#allocation4 + $0x18] sm:$0xff]
    %v159 = vlaneseq
    %v160 = vand.u32 %v159, 127
    %vm161 = vcmp.ge.s32.totalorder %v160, 64
    %vm162 = vcmp.lt.s32.totalorder %v160, 96
    %vm163 = vmand %vm161, %vm162
    %v164 = vsel %vm163, 2.0, 1.0
    %v165 = vsub.f32 %v164, 1.0
    %v166 = vld [vmem:[#allocation2] sm:$0x3]
    %vm167 = vcmask 261120
    %v169 = vsel %vm167, 0.0, 0
    %171 = vmatprep.subr.mxu0 0.0
    %172 = vmatpush1.msra.mxu0 %v155
    %173 = vmatprep.subr.mxu0 0.0
    %174 = vmatpush1.msra.mxu0 %v156
    %175 = vmatprep.subr.mxu0 0.0
    %176 = vmatpush1.msra.mxu0 %v157
    %177 = vmatprep.subr.mxu0 0.0
    %178 = vmatpush1.msra.mxu0 %v158
    %179 = vmatprep.subr.mxu0 0.0
    %180 = vmatpush1.msra.mxu0 0.0
    %181 = vmatprep.subr.mxu0 0.0
    %182 = vmatpush1.msra.mxu0 0.0
    %183 = vmatprep.subr.mxu0 0.0
    %184 = vmatpush1.msra.mxu0 0.0
    %185 = vmatprep.subr.mxu0 0.0
    %186 = vmatpush1.msra.mxu0 0.0
    %187 = vmatprep.subr.mxu0 0.0
    %188 = vmatpush1.msra.mxu0 0.0
    %189 = vmatprep.subr.mxu0 0.0
    %190 = vmatpush1.msra.mxu0 0.0
    %191 = vmatprep.subr.mxu0 0.0
    %192 = vmatpush1.msra.mxu0 0.0
    %193 = vmatprep.subr.mxu0 0.0
    %194 = vmatpush1.msra.mxu0 0.0
    %195 = vmatprep.subr.mxu0 0.0
    %196 = vmatpush1.msra.mxu0 0.0
    %197 = vmatprep.subr.mxu0 0.0
    %198 = vmatpush1.msra.mxu0 0.0
    %199 = vmatprep.subr.mxu0 0.0
    %200 = vmatpush1.msra.mxu0 0.0
    %201 = vmatprep.subr.mxu0 0.0
    %202 = vmatpush1.msra.mxu0 0.0
    %203 = vmatprep.subr.mxu0 0.0
    %204 = vmatpush1.msra.mxu0 0.0
    %205 = vmatprep.subr.mxu0 0.0
    %206 = vmatpush1.msra.mxu0 0.0
    %207 = vmatprep.subr.mxu0 0.0
    %208 = vmatpush1.msra.mxu0 0.0
    %209 = vmatprep.subr.mxu0 0.0
    %210 = vmatpush1.msra.mxu0 0.0
    %211 = vmatprep.subr.mxu0 0.0
    %212 = vmatpush1.msra.mxu0 0.0
    %213 = vmatprep.subr.mxu0 0.0
    %214 = vmatpush1.msra.mxu0 0.0
    %215 = vmatprep.subr.mxu0 0.0
    %216 = vmatpush1.msra.mxu0 0.0
    %217 = vmatprep.subr.mxu0 0.0
    %218 = vmatpush1.msra.mxu0 0.0
    %219 = vmatprep.subr.mxu0 0.0
    %220 = vmatpush1.msra.mxu0 0.0
    %221 = vmatprep.subr.mxu0 0.0
    %222 = vmatpush1.msra.mxu0 0.0
    %223 = vmatprep.subr.mxu0 0.0
    %224 = vmatpush1.msra.mxu0 0.0
    %225 = vmatprep.subr.mxu0 0.0
    %226 = vmatpush1.msra.mxu0 0.0
    %227 = vmatprep.subr.mxu0 0.0
    %228 = vmatpush1.msra.mxu0 0.0
    %229 = vmatprep.subr.mxu0 0.0
    %230 = vmatpush1.msra.mxu0 0.0
    %231 = vmatprep.subr.mxu0 0.0
    %232 = vmatpush1.msra.mxu0 0.0
    %233 = vmatprep.subr.mxu0 0.0
    %234 = vmatpush1.msra.mxu0 0.0
    %235 = vmatprep.mubr.f32.mxu0 0.0
    %236 = vmatmul.mubr.f32.gmra.mrb[0].mxu0 %v169
    %v237 = vpop.f32.mrb[0].mxu0
    %v238 = vadd.f32 0.0, %v237
    %v239 = vpop.f32.mrb[0].mxu0
    %240 = vdwg.mxu0
    %v241 = vadd.f32 %v166, %v238
    %v242 = vmul.f32 %v164, %v241
    %v243 = vxor.u32 %v242, 2147483648
    %v244 = vmul.f32 %v243, 1.442695
    %v245 = vpow.pop %v244
    %v246 = vadd.f32 %v245, 1.0
    %v247 = vrcp.pop %v246
    %v248 = vmul.f32 1.0, %v247
    %v249 = vmul.f32 %v164, %v248
    %v250 = vsub.f32 %v249, %v165
    %v251 = vmul.f32 %v250, 0.0
    %253 = vrot.lane.b32.xlu0 %v250, 64
    %v254 = vpop.permute.xlu0 %253
    %v256 = vmul.f32 %v250, %v254
    %258 = vrot.lane.b32.xlu0 %v256, 32
    %v259 = vpop.permute.xlu0 %258
    %v261 = vadd.f32 %v251, %v259
    %v262 = vtanh.pop %v261
    %264 = vrot.lane.b32.xlu0 %v262, 64
    %v265 = vpop.permute.xlu0 %264
    %v267 = vmul.f32 %v250, %v265
    %v268 = vld [vmem:[%s141] sm:$0x3]
    %270 = vrot.lane.b32.xlu0 %v267, 32
    %v271 = vpop.permute.xlu0 %270
    %v272 = vsel %vm167, %v271, 0
    %274 = vmatprep.subr.mxu0 0.0
    %275 = vmatpush1.msra.mxu0 %v155
    %276 = vmatprep.subr.mxu0 0.0
    %277 = vmatpush1.msra.mxu0 %v156
    %278 = vmatprep.subr.mxu0 0.0
    %279 = vmatpush1.msra.mxu0 %v157
    %280 = vmatprep.subr.mxu0 0.0
    %281 = vmatpush1.msra.mxu0 %v158
    %282 = vmatprep.subr.mxu0 0.0
    %283 = vmatpush1.msra.mxu0 0.0
    %284 = vmatprep.subr.mxu0 0.0
    %285 = vmatpush1.msra.mxu0 0.0
    %286 = vmatprep.subr.mxu0 0.0
    %287 = vmatpush1.msra.mxu0 0.0
    %288 = vmatprep.subr.mxu0 0.0
    %289 = vmatpush1.msra.mxu0 0.0
    %290 = vmatprep.subr.mxu0 0.0
    %291 = vmatpush1.msra.mxu0 0.0
    %292 = vmatprep.subr.mxu0 0.0
    %293 = vmatpush1.msra.mxu0 0.0
    %294 = vmatprep.subr.mxu0 0.0
    %295 = vmatpush1.msra.mxu0 0.0
    %296 = vmatprep.subr.mxu0 0.0
    %297 = vmatpush1.msra.mxu0 0.0
    %298 = vmatprep.subr.mxu0 0.0
    %299 = vmatpush1.msra.mxu0 0.0
    %300 = vmatprep.subr.mxu0 0.0
    %301 = vmatpush1.msra.mxu0 0.0
    %302 = vmatprep.subr.mxu0 0.0
    %303 = vmatpush1.msra.mxu0 0.0
    %304 = vmatprep.subr.mxu0 0.0
    %305 = vmatpush1.msra.mxu0 0.0
    %306 = vmatprep.subr.mxu0 0.0
    %307 = vmatpush1.msra.mxu0 0.0
    %308 = vmatprep.subr.mxu0 0.0
    %309 = vmatpush1.msra.mxu0 0.0
    %310 = vmatprep.subr.mxu0 0.0
    %311 = vmatpush1.msra.mxu0 0.0
    %312 = vmatprep.subr.mxu0 0.0
    %313 = vmatpush1.msra.mxu0 0.0
    %314 = vmatprep.subr.mxu0 0.0
    %315 = vmatpush1.msra.mxu0 0.0
    %316 = vmatprep.subr.mxu0 0.0
    %317 = vmatpush1.msra.mxu0 0.0
    %318 = vmatprep.subr.mxu0 0.0
    %319 = vmatpush1.msra.mxu0 0.0
    %320 = vmatprep.subr.mxu0 0.0
    %321 = vmatpush1.msra.mxu0 0.0
    %322 = vmatprep.subr.mxu0 0.0
    %323 = vmatpush1.msra.mxu0 0.0
    %324 = vmatprep.subr.mxu0 0.0
    %325 = vmatpush1.msra.mxu0 0.0
    %326 = vmatprep.subr.mxu0 0.0
    %327 = vmatpush1.msra.mxu0 0.0
    %328 = vmatprep.subr.mxu0 0.0
    %329 = vmatpush1.msra.mxu0 0.0
    %330 = vmatprep.subr.mxu0 0.0
    %331 = vmatpush1.msra.mxu0 0.0
    %332 = vmatprep.subr.mxu0 0.0
    %333 = vmatpush1.msra.mxu0 0.0
    %334 = vmatprep.subr.mxu0 0.0
    %335 = vmatpush1.msra.mxu0 0.0
    %336 = vmatprep.subr.mxu0 0.0
    %337 = vmatpush1.msra.mxu0 0.0
    %338 = vmatprep.mubr.f32.mxu0 0.0
    %339 = vmatmul.mubr.f32.gmra.mrb[0].mxu0 %v272
    %v340 = vpop.f32.mrb[0].mxu0
    %v341 = vadd.f32 0.0, %v340
    %v342 = vpop.f32.mrb[0].mxu0
    %343 = vdwg.mxu0
    %v344 = vadd.f32 %v268, %v341
    %v345 = vmul.f32 %v164, %v344
    %v346 = vxor.u32 %v345, 2147483648
    %v347 = vmul.f32 %v346, 1.442695
    %v348 = vpow.pop %v347
    %v349 = vadd.f32 %v348, 1.0
    %v350 = vrcp.pop %v349
    %v351 = vmul.f32 1.0, %v350
    %v352 = vmul.f32 %v164, %v351
    %v353 = vsub.f32 %v352, %v165
    %v354 = vmul.f32 %v353, %v261
    %356 = vrot.lane.b32.xlu0 %v353, 64
    %v357 = vpop.permute.xlu0 %356
    %v359 = vmul.f32 %v353, %v357
    %361 = vrot.lane.b32.xlu0 %v359, 32
    %v362 = vpop.permute.xlu0 %361
    %v364 = vadd.f32 %v354, %v362
    %v365 = vtanh.pop %v364
    %367 = vrot.lane.b32.xlu0 %v365, 64
    %v368 = vpop.permute.xlu0 %367
    %v370 = vmul.f32 %v353, %v368
    %v371 = vld [vmem:[%s143] sm:$0x3]
    %373 = vrot.lane.b32.xlu0 %v370, 32
    %v374 = vpop.permute.xlu0 %373
    %v375 = vsel %vm167, %v374, 0
    %377 = vmatprep.subr.mxu0 0.0
    %378 = vmatpush1.msra.mxu0 %v155
    %379 = vmatprep.subr.mxu0 0.0
    %380 = vmatpush1.msra.mxu0 %v156
    %381 = vmatprep.subr.mxu0 0.0
    %382 = vmatpush1.msra.mxu0 %v157
    %383 = vmatprep.subr.mxu0 0.0
    %384 = vmatpush1.msra.mxu0 %v158
    %385 = vmatprep.subr.mxu0 0.0
    %386 = vmatpush1.msra.mxu0 0.0
    %387 = vmatprep.subr.mxu0 0.0
    %388 = vmatpush1.msra.mxu0 0.0
    %389 = vmatprep.subr.mxu0 0.0
    %390 = vmatpush1.msra.mxu0 0.0
    %391 = vmatprep.subr.mxu0 0.0
    %392 = vmatpush1.msra.mxu0 0.0
    %393 = vmatprep.subr.mxu0 0.0
    %394 = vmatpush1.msra.mxu0 0.0
    %395 = vmatprep.subr.mxu0 0.0
    %396 = vmatpush1.msra.mxu0 0.0
    %397 = vmatprep.subr.mxu0 0.0
    %398 = vmatpush1.msra.mxu0 0.0
    %399 = vmatprep.subr.mxu0 0.0
    %400 = vmatpush1.msra.mxu0 0.0
    %401 = vmatprep.subr.mxu0 0.0
    %402 = vmatpush1.msra.mxu0 0.0
    %403 = vmatprep.subr.mxu0 0.0
    %404 = vmatpush1.msra.mxu0 0.0
    %405 = vmatprep.subr.mxu0 0.0
    %406 = vmatpush1.msra.mxu0 0.0
    %407 = vmatprep.subr.mxu0 0.0
    %408 = vmatpush1.msra.mxu0 0.0
    %409 = vmatprep.subr.mxu0 0.0
    %410 = vmatpush1.msra.mxu0 0.0
    %411 = vmatprep.subr.mxu0 0.0
    %412 = vmatpush1.msra.mxu0 0.0
    %413 = vmatprep.subr.mxu0 0.0
    %414 = vmatpush1.msra.mxu0 0.0
    %415 = vmatprep.subr.mxu0 0.0
    %416 = vmatpush1.msra.mxu0 0.0
    %417 = vmatprep.subr.mxu0 0.0
    %418 = vmatpush1.msra.mxu0 0.0
    %419 = vmatprep.subr.mxu0 0.0
    %420 = vmatpush1.msra.mxu0 0.0
    %421 = vmatprep.subr.mxu0 0.0
    %422 = vmatpush1.msra.mxu0 0.0
    %423 = vmatprep.subr.mxu0 0.0
    %424 = vmatpush1.msra.mxu0 0.0
    %425 = vmatprep.subr.mxu0 0.0
    %426 = vmatpush1.msra.mxu0 0.0
    %427 = vmatprep.subr.mxu0 0.0
    %428 = vmatpush1.msra.mxu0 0.0
    %429 = vmatprep.subr.mxu0 0.0
    %430 = vmatpush1.msra.mxu0 0.0
    %431 = vmatprep.subr.mxu0 0.0
    %432 = vmatpush1.msra.mxu0 0.0
    %433 = vmatprep.subr.mxu0 0.0
    %434 = vmatpush1.msra.mxu0 0.0
    %435 = vmatprep.subr.mxu0 0.0
    %436 = vmatpush1.msra.mxu0 0.0
    %437 = vmatprep.subr.mxu0 0.0
    %438 = vmatpush1.msra.mxu0 0.0
    %439 = vmatprep.subr.mxu0 0.0
    %440 = vmatpush1.msra.mxu0 0.0
    %441 = vmatprep.mubr.f32.mxu0 0.0
    %442 = vmatmul.mubr.f32.gmra.mrb[0].mxu0 %v375
    %v443 = vpop.f32.mrb[0].mxu0
    %v444 = vadd.f32 0.0, %v443
    %v445 = vpop.f32.mrb[0].mxu0
    %446 = vdwg.mxu0
    %v447 = vadd.f32 %v371, %v444
    %v448 = vmul.f32 %v164, %v447
    %v449 = vxor.u32 %v448, 2147483648
    %v450 = vmul.f32 %v449, 1.442695
    %v451 = vpow.pop %v450
    %v452 = vadd.f32 %v451, 1.0
    %v453 = vrcp.pop %v452
    %v454 = vmul.f32 1.0, %v453
    %v455 = vmul.f32 %v164, %v454
    %v456 = vsub.f32 %v455, %v165
    %v457 = vmul.f32 %v456, %v364
    %459 = vrot.lane.b32.xlu0 %v456, 64
    %v460 = vpop.permute.xlu0 %459
    %v462 = vmul.f32 %v456, %v460
    %464 = vrot.lane.b32.xlu0 %v462, 32
    %v465 = vpop.permute.xlu0 %464
    %v467 = vadd.f32 %v457, %v465
    %v468 = vtanh.pop %v467
    %470 = vrot.lane.b32.xlu0 %v468, 64
    %v471 = vpop.permute.xlu0 %470
    %v473 = vmul.f32 %v456, %v471
    %v474 = vld [vmem:[%s145] sm:$0x3]
    %476 = vrot.lane.b32.xlu0 %v473, 32
    %v477 = vpop.permute.xlu0 %476
    %v478 = vsel %vm167, %v477, 0
    %480 = vmatprep.subr.mxu0 0.0
    %481 = vmatpush1.msra.mxu0 %v155
    %482 = vmatprep.subr.mxu0 0.0
    %483 = vmatpush1.msra.mxu0 %v156
    %484 = vmatprep.subr.mxu0 0.0
    %485 = vmatpush1.msra.mxu0 %v157
    %486 = vmatprep.subr.mxu0 0.0
    %487 = vmatpush1.msra.mxu0 %v158
    %488 = vmatprep.subr.mxu0 0.0
    %489 = vmatpush1.msra.mxu0 0.0
    %490 = vmatprep.subr.mxu0 0.0
    %491 = vmatpush1.msra.mxu0 0.0
    %492 = vmatprep.subr.mxu0 0.0
    %493 = vmatpush1.msra.mxu0 0.0
    %494 = vmatprep.subr.mxu0 0.0
    %495 = vmatpush1.msra.mxu0 0.0
    %496 = vmatprep.subr.mxu0 0.0
    %497 = vmatpush1.msra.mxu0 0.0
    %498 = vmatprep.subr.mxu0 0.0
    %499 = vmatpush1.msra.mxu0 0.0
    %500 = vmatprep.subr.mxu0 0.0
    %501 = vmatpush1.msra.mxu0 0.0
    %502 = vmatprep.subr.mxu0 0.0
    %503 = vmatpush1.msra.mxu0 0.0
    %504 = vmatprep.subr.mxu0 0.0
    %505 = vmatpush1.msra.mxu0 0.0
    %506 = vmatprep.subr.mxu0 0.0
    %507 = vmatpush1.msra.mxu0 0.0
    %508 = vmatprep.subr.mxu0 0.0
    %509 = vmatpush1.msra.mxu0 0.0
    %510 = vmatprep.subr.mxu0 0.0
    %511 = vmatpush1.msra.mxu0 0.0
    %512 = vmatprep.subr.mxu0 0.0
    %513 = vmatpush1.msra.mxu0 0.0
    %514 = vmatprep.subr.mxu0 0.0
    %515 = vmatpush1.msra.mxu0 0.0
    %516 = vmatprep.subr.mxu0 0.0
    %517 = vmatpush1.msra.mxu0 0.0
    %518 = vmatprep.subr.mxu0 0.0
    %519 = vmatpush1.msra.mxu0 0.0
    %520 = vmatprep.subr.mxu0 0.0
    %521 = vmatpush1.msra.mxu0 0.0
    %522 = vmatprep.subr.mxu0 0.0
    %523 = vmatpush1.msra.mxu0 0.0
    %524 = vmatprep.subr.mxu0 0.0
    %525 = vmatpush1.msra.mxu0 0.0
    %526 = vmatprep.subr.mxu0 0.0
    %527 = vmatpush1.msra.mxu0 0.0
    %528 = vmatprep.subr.mxu0 0.0
    %529 = vmatpush1.msra.mxu0 0.0
    %530 = vmatprep.subr.mxu0 0.0
    %531 = vmatpush1.msra.mxu0 0.0
    %532 = vmatprep.subr.mxu0 0.0
    %533 = vmatpush1.msra.mxu0 0.0
    %534 = vmatprep.subr.mxu0 0.0
    %535 = vmatpush1.msra.mxu0 0.0
    %536 = vmatprep.subr.mxu0 0.0
    %537 = vmatpush1.msra.mxu0 0.0
    %538 = vmatprep.subr.mxu0 0.0
    %539 = vmatpush1.msra.mxu0 0.0
    %540 = vmatprep.subr.mxu0 0.0
    %541 = vmatpush1.msra.mxu0 0.0
    %542 = vmatprep.subr.mxu0 0.0
    %543 = vmatpush1.msra.mxu0 0.0
    %544 = vmatprep.mubr.f32.mxu0 0.0
    %545 = vmatmul.mubr.f32.gmra.mrb[0].mxu0 %v478
    %v546 = vpop.f32.mrb[0].mxu0
    %v547 = vadd.f32 0.0, %v546
    %v548 = vpop.f32.mrb[0].mxu0
    %549 = vdwg.mxu0
    %v550 = vadd.f32 %v474, %v547
    %v551 = vmul.f32 %v164, %v550
    %v552 = vxor.u32 %v551, 2147483648
    %v553 = vmul.f32 %v552, 1.442695
    %v554 = vpow.pop %v553
    %v555 = vadd.f32 %v554, 1.0
    %v556 = vrcp.pop %v555
    %v557 = vmul.f32 1.0, %v556
    %v558 = vmul.f32 %v164, %v557
    %v559 = vsub.f32 %v558, %v165
    %v560 = vmul.f32 %v559, %v467
    %562 = vrot.lane.b32.xlu0 %v559, 64
    %v563 = vpop.permute.xlu0 %562
    %v565 = vmul.f32 %v559, %v563
    %567 = vrot.lane.b32.xlu0 %v565, 32
    %v568 = vpop.permute.xlu0 %567
    %v570 = vadd.f32 %v560, %v568
    %v571 = vtanh.pop %v570
    %573 = vrot.lane.b32.xlu0 %v571, 64
    %v574 = vpop.permute.xlu0 %573
    %v576 = vmul.f32 %v559, %v574
    %v577 = vld [vmem:[%s147] sm:$0x3]
    %579 = vrot.lane.b32.xlu0 %v576, 32
    %v580 = vpop.permute.xlu0 %579
    %v581 = vsel %vm167, %v580, 0
    %583 = vmatprep.subr.mxu0 0.0
    %584 = vmatpush1.msra.mxu0 %v155
    %585 = vmatprep.subr.mxu0 0.0
    %586 = vmatpush1.msra.mxu0 %v156
    %587 = vmatprep.subr.mxu0 0.0
    %588 = vmatpush1.msra.mxu0 %v157
    %589 = vmatprep.subr.mxu0 0.0
    %590 = vmatpush1.msra.mxu0 %v158
    %591 = vmatprep.subr.mxu0 0.0
    %592 = vmatpush1.msra.mxu0 0.0
    %593 = vmatprep.subr.mxu0 0.0
    %594 = vmatpush1.msra.mxu0 0.0
    %595 = vmatprep.subr.mxu0 0.0
    %596 = vmatpush1.msra.mxu0 0.0
    %597 = vmatprep.subr.mxu0 0.0
    %598 = vmatpush1.msra.mxu0 0.0
    %599 = vmatprep.subr.mxu0 0.0
    %600 = vmatpush1.msra.mxu0 0.0
    %601 = vmatprep.subr.mxu0 0.0
    %602 = vmatpush1.msra.mxu0 0.0
    %603 = vmatprep.subr.mxu0 0.0
    %604 = vmatpush1.msra.mxu0 0.0
    %605 = vmatprep.subr.mxu0 0.0
    %606 = vmatpush1.msra.mxu0 0.0
    %607 = vmatprep.subr.mxu0 0.0
    %608 = vmatpush1.msra.mxu0 0.0
    %609 = vmatprep.subr.mxu0 0.0
    %610 = vmatpush1.msra.mxu0 0.0
    %611 = vmatprep.subr.mxu0 0.0
    %612 = vmatpush1.msra.mxu0 0.0
    %613 = vmatprep.subr.mxu0 0.0
    %614 = vmatpush1.msra.mxu0 0.0
    %615 = vmatprep.subr.mxu0 0.0
    %616 = vmatpush1.msra.mxu0 0.0
    %617 = vmatprep.subr.mxu0 0.0
    %618 = vmatpush1.msra.mxu0 0.0
    %619 = vmatprep.subr.mxu0 0.0
    %620 = vmatpush1.msra.mxu0 0.0
    %621 = vmatprep.subr.mxu0 0.0
    %622 = vmatpush1.msra.mxu0 0.0
    %623 = vmatprep.subr.mxu0 0.0
    %624 = vmatpush1.msra.mxu0 0.0
    %625 = vmatprep.subr.mxu0 0.0
    %626 = vmatpush1.msra.mxu0 0.0
    %627 = vmatprep.subr.mxu0 0.0
    %628 = vmatpush1.msra.mxu0 0.0
    %629 = vmatprep.subr.mxu0 0.0
    %630 = vmatpush1.msra.mxu0 0.0
    %631 = vmatprep.subr.mxu0 0.0
    %632 = vmatpush1.msra.mxu0 0.0
    %633 = vmatprep.subr.mxu0 0.0
    %634 = vmatpush1.msra.mxu0 0.0
    %635 = vmatprep.subr.mxu0 0.0
    %636 = vmatpush1.msra.mxu0 0.0
    %637 = vmatprep.subr.mxu0 0.0
    %638 = vmatpush1.msra.mxu0 0.0
    %639 = vmatprep.subr.mxu0 0.0
    %640 = vmatpush1.msra.mxu0 0.0
    %641 = vmatprep.subr.mxu0 0.0
    %642 = vmatpush1.msra.mxu0 0.0
    %643 = vmatprep.subr.mxu0 0.0
    %644 = vmatpush1.msra.mxu0 0.0
    %645 = vmatprep.subr.mxu0 0.0
    %646 = vmatpush1.msra.mxu0 0.0
    %647 = vmatprep.mubr.f32.mxu0 0.0
    %648 = vmatmul.mubr.f32.gmra.mrb[0].mxu0 %v581
    %v649 = vpop.f32.mrb[0].mxu0
    %v650 = vadd.f32 0.0, %v649
    %v651 = vpop.f32.mrb[0].mxu0
    %652 = vdwg.mxu0
    %v653 = vadd.f32 %v577, %v650
    %v654 = vmul.f32 %v164, %v653
    %v655 = vxor.u32 %v654, 2147483648
    %v656 = vmul.f32 %v655, 1.442695
    %v657 = vpow.pop %v656
    %v658 = vadd.f32 %v657, 1.0
    %v659 = vrcp.pop %v658
    %v660 = vmul.f32 1.0, %v659
    %v661 = vmul.f32 %v164, %v660
    %v662 = vsub.f32 %v661, %v165
    %v663 = vmul.f32 %v662, %v570
    %665 = vrot.lane.b32.xlu0 %v662, 64
    %v666 = vpop.permute.xlu0 %665
    %v668 = vmul.f32 %v662, %v666
    %670 = vrot.lane.b32.xlu0 %v668, 32
    %v671 = vpop.permute.xlu0 %670
    %v673 = vadd.f32 %v663, %v671
    %v674 = vtanh.pop %v673
    %676 = vrot.lane.b32.xlu0 %v674, 64
    %v677 = vpop.permute.xlu0 %676
    %v679 = vmul.f32 %v662, %v677
    %v680 = vld [vmem:[%s149] sm:$0x3]
    %682 = vrot.lane.b32.xlu0 %v679, 32
    %v683 = vpop.permute.xlu0 %682
    %v684 = vsel %vm167, %v683, 0
    %686 = vmatprep.subr.mxu0 0.0
    %687 = vmatpush1.msra.mxu0 %v155
    %688 = vmatprep.subr.mxu0 0.0
    %689 = vmatpush1.msra.mxu0 %v156
    %690 = vmatprep.subr.mxu0 0.0
    %691 = vmatpush1.msra.mxu0 %v157
    %692 = vmatprep.subr.mxu0 0.0
    %693 = vmatpush1.msra.mxu0 %v158
    %694 = vmatprep.subr.mxu0 0.0
    %695 = vmatpush1.msra.mxu0 0.0
    %696 = vmatprep.subr.mxu0 0.0
    %697 = vmatpush1.msra.mxu0 0.0
    %698 = vmatprep.subr.mxu0 0.0
    %699 = vmatpush1.msra.mxu0 0.0
    %700 = vmatprep.subr.mxu0 0.0
    %701 = vmatpush1.msra.mxu0 0.0
    %702 = vmatprep.subr.mxu0 0.0
    %703 = vmatpush1.msra.mxu0 0.0
    %704 = vmatprep.subr.mxu0 0.0
    %705 = vmatpush1.msra.mxu0 0.0
    %706 = vmatprep.subr.mxu0 0.0
    %707 = vmatpush1.msra.mxu0 0.0
    %708 = vmatprep.subr.mxu0 0.0
    %709 = vmatpush1.msra.mxu0 0.0
    %710 = vmatprep.subr.mxu0 0.0
    %711 = vmatpush1.msra.mxu0 0.0
    %712 = vmatprep.subr.mxu0 0.0
    %713 = vmatpush1.msra.mxu0 0.0
    %714 = vmatprep.subr.mxu0 0.0
    %715 = vmatpush1.msra.mxu0 0.0
    %716 = vmatprep.subr.mxu0 0.0
    %717 = vmatpush1.msra.mxu0 0.0
    %718 = vmatprep.subr.mxu0 0.0
    %719 = vmatpush1.msra.mxu0 0.0
    %720 = vmatprep.subr.mxu0 0.0
    %721 = vmatpush1.msra.mxu0 0.0
    %722 = vmatprep.subr.mxu0 0.0
    %723 = vmatpush1.msra.mxu0 0.0
    %724 = vmatprep.subr.mxu0 0.0
    %725 = vmatpush1.msra.mxu0 0.0
    %726 = vmatprep.subr.mxu0 0.0
    %727 = vmatpush1.msra.mxu0 0.0
    %728 = vmatprep.subr.mxu0 0.0
    %729 = vmatpush1.msra.mxu0 0.0
    %730 = vmatprep.subr.mxu0 0.0
    %731 = vmatpush1.msra.mxu0 0.0
    %732 = vmatprep.subr.mxu0 0.0
    %733 = vmatpush1.msra.mxu0 0.0
    %734 = vmatprep.subr.mxu0 0.0
    %735 = vmatpush1.msra.mxu0 0.0
    %736 = vmatprep.subr.mxu0 0.0
    %737 = vmatpush1.msra.mxu0 0.0
    %738 = vmatprep.subr.mxu0 0.0
    %739 = vmatpush1.msra.mxu0 0.0
    %740 = vmatprep.subr.mxu0 0.0
    %741 = vmatpush1.msra.mxu0 0.0
    %742 = vmatprep.subr.mxu0 0.0
    %743 = vmatpush1.msra.mxu0 0.0
    %744 = vmatprep.subr.mxu0 0.0
    %745 = vmatpush1.msra.mxu0 0.0
    %746 = vmatprep.subr.mxu0 0.0
    %747 = vmatpush1.msra.mxu0 0.0
    %748 = vmatprep.subr.mxu0 0.0
    %749 = vmatpush1.msra.mxu0 0.0
    %750 = vmatprep.mubr.f32.mxu0 0.0
    %751 = vmatmul.mubr.f32.gmra.mrb[0].mxu0 %v684
    %v752 = vpop.f32.mrb[0].mxu0
    %v753 = vadd.f32 0.0, %v752
    %v754 = vpop.f32.mrb[0].mxu0
    %755 = vdwg.mxu0
    %v756 = vadd.f32 %v680, %v753
    %v757 = vmul.f32 %v164, %v756
    %v758 = vxor.u32 %v757, 2147483648
    %v759 = vmul.f32 %v758, 1.442695
    %v760 = vpow.pop %v759
    %v761 = vadd.f32 %v760, 1.0
    %v762 = vrcp.pop %v761
    %v763 = vmul.f32 1.0, %v762
    %v764 = vmul.f32 %v164, %v763
    %v765 = vsub.f32 %v764, %v165
    %v766 = vmul.f32 %v765, %v673
    %768 = vrot.lane.b32.xlu0 %v765, 64
    %v769 = vpop.permute.xlu0 %768
    %v771 = vmul.f32 %v765, %v769
    %773 = vrot.lane.b32.xlu0 %v771, 32
    %v774 = vpop.permute.xlu0 %773
    %v776 = vadd.f32 %v766, %v774
    %v777 = vtanh.pop %v776
    %779 = vrot.lane.b32.xlu0 %v777, 64
    %v780 = vpop.permute.xlu0 %779
    %v782 = vmul.f32 %v765, %v780
    %v783 = vld [vmem:[%s151] sm:$0x3]
    %785 = vrot.lane.b32.xlu0 %v782, 32
    %v786 = vpop.permute.xlu0 %785
    %v787 = vsel %vm167, %v786, 0
    %789 = vmatprep.subr.mxu0 0.0
    %790 = vmatpush1.msra.mxu0 %v155
    %791 = vmatprep.subr.mxu0 0.0
    %792 = vmatpush1.msra.mxu0 %v156
    %793 = vmatprep.subr.mxu0 0.0
    %794 = vmatpush1.msra.mxu0 %v157
    %795 = vmatprep.subr.mxu0 0.0
    %796 = vmatpush1.msra.mxu0 %v158
    %797 = vmatprep.subr.mxu0 0.0
    %798 = vmatpush1.msra.mxu0 0.0
    %799 = vmatprep.subr.mxu0 0.0
    %800 = vmatpush1.msra.mxu0 0.0
    %801 = vmatprep.subr.mxu0 0.0
    %802 = vmatpush1.msra.mxu0 0.0
    %803 = vmatprep.subr.mxu0 0.0
    %804 = vmatpush1.msra.mxu0 0.0
    %805 = vmatprep.subr.mxu0 0.0
    %806 = vmatpush1.msra.mxu0 0.0
    %807 = vmatprep.subr.mxu0 0.0
    %808 = vmatpush1.msra.mxu0 0.0
    %809 = vmatprep.subr.mxu0 0.0
    %810 = vmatpush1.msra.mxu0 0.0
    %811 = vmatprep.subr.mxu0 0.0
    %812 = vmatpush1.msra.mxu0 0.0
    %813 = vmatprep.subr.mxu0 0.0
    %814 = vmatpush1.msra.mxu0 0.0
    %815 = vmatprep.subr.mxu0 0.0
    %816 = vmatpush1.msra.mxu0 0.0
    %817 = vmatprep.subr.mxu0 0.0
    %818 = vmatpush1.msra.mxu0 0.0
    %819 = vmatprep.subr.mxu0 0.0
    %820 = vmatpush1.msra.mxu0 0.0
    %821 = vmatprep.subr.mxu0 0.0
    %822 = vmatpush1.msra.mxu0 0.0
    %823 = vmatprep.subr.mxu0 0.0
    %824 = vmatpush1.msra.mxu0 0.0
    %825 = vmatprep.subr.mxu0 0.0
    %826 = vmatpush1.msra.mxu0 0.0
    %827 = vmatprep.subr.mxu0 0.0
    %828 = vmatpush1.msra.mxu0 0.0
    %829 = vmatprep.subr.mxu0 0.0
    %830 = vmatpush1.msra.mxu0 0.0
    %831 = vmatprep.subr.mxu0 0.0
    %832 = vmatpush1.msra.mxu0 0.0
    %833 = vmatprep.subr.mxu0 0.0
    %834 = vmatpush1.msra.mxu0 0.0
    %835 = vmatprep.subr.mxu0 0.0
    %836 = vmatpush1.msra.mxu0 0.0
    %837 = vmatprep.subr.mxu0 0.0
    %838 = vmatpush1.msra.mxu0 0.0
    %839 = vmatprep.subr.mxu0 0.0
    %840 = vmatpush1.msra.mxu0 0.0
    %841 = vmatprep.subr.mxu0 0.0
    %842 = vmatpush1.msra.mxu0 0.0
    %843 = vmatprep.subr.mxu0 0.0
    %844 = vmatpush1.msra.mxu0 0.0
    %845 = vmatprep.subr.mxu0 0.0
    %846 = vmatpush1.msra.mxu0 0.0
    %847 = vmatprep.subr.mxu0 0.0
    %848 = vmatpush1.msra.mxu0 0.0
    %849 = vmatprep.subr.mxu0 0.0
    %850 = vmatpush1.msra.mxu0 0.0
    %851 = vmatprep.subr.mxu0 0.0
    %852 = vmatpush1.msra.mxu0 0.0
    %853 = vmatprep.mubr.f32.mxu0 0.0
    %854 = vmatmul.mubr.f32.gmra.mrb[0].mxu0 %v787
    %v855 = vpop.f32.mrb[0].mxu0
    %v856 = vadd.f32 0.0, %v855
    %v857 = vpop.f32.mrb[0].mxu0
    %858 = vdwg.mxu0
    %v859 = vadd.f32 %v783, %v856
    %v860 = vmul.f32 %v164, %v859
    %v861 = vxor.u32 %v860, 2147483648
    %v862 = vmul.f32 %v861, 1.442695
    %v863 = vpow.pop %v862
    %v864 = vadd.f32 %v863, 1.0
    %v865 = vrcp.pop %v864
    %v866 = vmul.f32 1.0, %v865
    %v867 = vmul.f32 %v164, %v866
    %v868 = vsub.f32 %v867, %v165
    %v869 = vmul.f32 %v868, %v776
    %871 = vrot.lane.b32.xlu0 %v868, 64
    %v872 = vpop.permute.xlu0 %871
    %v874 = vmul.f32 %v868, %v872
    %876 = vrot.lane.b32.xlu0 %v874, 32
    %v877 = vpop.permute.xlu0 %876
    %v879 = vadd.f32 %v869, %v877
    %v880 = vtanh.pop %v879
    %882 = vrot.lane.b32.xlu0 %v880, 64
    %v883 = vpop.permute.xlu0 %882
    %v885 = vmul.f32 %v868, %v883
    %v886 = vld [vmem:[%s153] sm:$0x3]
    %888 = vrot.lane.b32.xlu0 %v885, 32
    %v889 = vpop.permute.xlu0 %888
    %v890 = vsel %vm167, %v889, 0
    %892 = vmatprep.subr.mxu0 0.0
    %893 = vmatpush1.msra.mxu0 %v155
    %894 = vmatprep.subr.mxu0 0.0
    %895 = vmatpush1.msra.mxu0 %v156
    %896 = vmatprep.subr.mxu0 0.0
    %897 = vmatpush1.msra.mxu0 %v157
    %898 = vmatprep.subr.mxu0 0.0
    %899 = vmatpush1.msra.mxu0 %v158
    %900 = vmatprep.subr.mxu0 0.0
    %901 = vmatpush1.msra.mxu0 0.0
    %902 = vmatprep.subr.mxu0 0.0
    %903 = vmatpush1.msra.mxu0 0.0
    %904 = vmatprep.subr.mxu0 0.0
    %905 = vmatpush1.msra.mxu0 0.0
    %906 = vmatprep.subr.mxu0 0.0
    %907 = vmatpush1.msra.mxu0 0.0
    %908 = vmatprep.subr.mxu0 0.0
    %909 = vmatpush1.msra.mxu0 0.0
    %910 = vmatprep.subr.mxu0 0.0
    %911 = vmatpush1.msra.mxu0 0.0
    %912 = vmatprep.subr.mxu0 0.0
    %913 = vmatpush1.msra.mxu0 0.0
    %914 = vmatprep.subr.mxu0 0.0
    %915 = vmatpush1.msra.mxu0 0.0
    %916 = vmatprep.subr.mxu0 0.0
    %917 = vmatpush1.msra.mxu0 0.0
    %918 = vmatprep.subr.mxu0 0.0
    %919 = vmatpush1.msra.mxu0 0.0
    %920 = vmatprep.subr.mxu0 0.0
    %921 = vmatpush1.msra.mxu0 0.0
    %922 = vmatprep.subr.mxu0 0.0
    %923 = vmatpush1.msra.mxu0 0.0
    %924 = vmatprep.subr.mxu0 0.0
    %925 = vmatpush1.msra.mxu0 0.0
    %926 = vmatprep.subr.mxu0 0.0
    %927 = vmatpush1.msra.mxu0 0.0
    %928 = vmatprep.subr.mxu0 0.0
    %929 = vmatpush1.msra.mxu0 0.0
    %930 = vmatprep.subr.mxu0 0.0
    %931 = vmatpush1.msra.mxu0 0.0
    %932 = vmatprep.subr.mxu0 0.0
    %933 = vmatpush1.msra.mxu0 0.0
    %934 = vmatprep.subr.mxu0 0.0
    %935 = vmatpush1.msra.mxu0 0.0
    %936 = vmatprep.subr.mxu0 0.0
    %937 = vmatpush1.msra.mxu0 0.0
    %938 = vmatprep.subr.mxu0 0.0
    %939 = vmatpush1.msra.mxu0 0.0
    %940 = vmatprep.subr.mxu0 0.0
    %941 = vmatpush1.msra.mxu0 0.0
    %942 = vmatprep.subr.mxu0 0.0
    %943 = vmatpush1.msra.mxu0 0.0
    %944 = vmatprep.subr.mxu0 0.0
    %945 = vmatpush1.msra.mxu0 0.0
    %946 = vmatprep.subr.mxu0 0.0
    %947 = vmatpush1.msra.mxu0 0.0
    %948 = vmatprep.subr.mxu0 0.0
    %949 = vmatpush1.msra.mxu0 0.0
    %950 = vmatprep.subr.mxu0 0.0
    %951 = vmatpush1.msra.mxu0 0.0
    %952 = vmatprep.subr.mxu0 0.0
    %953 = vmatpush1.msra.mxu0 0.0
    %954 = vmatprep.subr.mxu0 0.0
    %955 = vmatpush1.msra.mxu0 0.0
    %956 = vmatprep.mubr.f32.mxu0 0.0
    %957 = vmatmul.mubr.f32.gmra.mrb[0].mxu0 %v890
    %v958 = vpop.f32.mrb[0].mxu0
    %v959 = vadd.f32 0.0, %v958
    %v960 = vpop.f32.mrb[0].mxu0
    %961 = vdwg.mxu0
    %v962 = vadd.f32 %v886, %v959
    %v963 = vmul.f32 %v164, %v962
    %v964 = vxor.u32 %v963, 2147483648
    %v965 = vmul.f32 %v964, 1.442695
    %v966 = vpow.pop %v965
    %v967 = vadd.f32 %v966, 1.0
    %v968 = vrcp.pop %v967
    %v969 = vmul.f32 1.0, %v968
    %v970 = vmul.f32 %v164, %v969
    %v971 = vsub.f32 %v970, %v165
    %v972 = vmul.f32 %v971, %v879
    %974 = vrot.lane.b32.xlu0 %v971, 64
    %v975 = vpop.permute.xlu0 %974
    %v977 = vmul.f32 %v971, %v975
    %979 = vrot.lane.b32.xlu0 %v977, 32
    %v980 = vpop.permute.xlu0 %979
    %v982 = vadd.f32 %v972, %v980
    %v983 = vtanh.pop %v982
    %985 = vrot.lane.b32.xlu0 %v983, 64
    %v986 = vpop.permute.xlu0 %985
    %v988 = vmul.f32 %v971, %v986
    %v989 = vld [vmem:[%s5] sm:$0x1]
    %v991 = vlaneseq
    %v992 = vshrl.u32 %v991, 7
    %v993 = vsub.s32 0, %v992
    %v994 = vrot.slane %v989, %v993
    %995 = vrot.lane.b32.xlu0 %v994, 96
    %v996 = vpop.permute.xlu0 %995
    %v998 = vmul.f32 %v988, %v996
    %1000 = vrot.lane.b32.xlu0 %v998, 32
    %v1001 = vpop.permute.xlu0 %1000
    %vm1003 = vcmask 254976
    %v1004 = vsel %vm1003, %v1001, 0.0
    %1005 = vadd.xlane.f32.xlu0 %v1004
    %v1006 = vpop.xlane.xlu0 %1005
    %v1007 = vld [vmem:[#allocation3] sm:$0x1]
    %v1009 = vlaneseq
    %v1010 = vshrl.u32 %v1009, 7
    %v1011 = vsub.s32 0, %v1010
    %v1012 = vrot.slane %v1007, %v1011
    %v1014 = vadd.f32 %v1006, %v1012
    %vm1015 = vcmask 1024
    %1016 = vst.msk [vmem:[%s7] sm:$0x3] %vm1015, %v1014
    // Predicated region
    $region34: #{tpu_custom_call.1} parent=1 // pred_check
      _
    $region35: #{tpu_custom_call.1} parent=1 // pred_check_branch
      %1018 = sbr.rel (0) target = $region37
    $region36: #{tpu_custom_call.1} parent=1 // pred_region
      _
    $region37: #{tpu_custom_call.1} parent=1 // pred_fallthru
      _
    // Predicated region
    $region38: #{tpu_custom_call.1} parent=1 // pred_check
      _
    $region39: #{tpu_custom_call.1} parent=1 // pred_check_branch
      %1020 = sbr.rel (0) target = $region41
    $region40: #{tpu_custom_call.1} parent=1 // pred_region
      _
    $region41: #{tpu_custom_call.1} parent=1 // pred_fallthru
      _
    %1021 = vsyncpa [#allocation5], 1

</llo_original>
